<compile_context>
chip_gen: v7x
topology: tpu7x:2x2x1
jax: 0.10.0
libtpu: 0.0.40
codegen_flags: <defaults>
</compile_context>

<pallas_src>
import jax
import jax.numpy as jnp
from jax.experimental import pallas as pl
from jax.experimental.pallas import tpu as pltpu

N_STATES = 6
N_PARAMS = 7
LANE_BLOCK = 128   # lanes per block (vreg lane width)
SUB_BLOCK = 8      # sublanes per block -> full (8,128) f32 vreg tiles
BIG_SUB_BLOCK = 64 # block rows for very large batches (>= 32768 states)


# ----------------------------------------------------------------------------
# Kernels
# ----------------------------------------------------------------------------
def _baird_all_v_kernel(m_ref, theta_ref, v_ref):
    # m_ref:     VMEM (6, 7) f32
    # theta_ref: VMEM (1, 7) f32
    # v_ref:     VMEM (6, 1) f32   -- v[s] = dot(M[s, :], theta)
    v_ref[...] = jnp.sum(m_ref[...] * theta_ref[...], axis=1, keepdims=True)


def _baird_gather_kernel(v_ref, states_ref, out_ref):
    # v_ref:      SMEM (6,) f32  -- precomputed v = M @ theta, resident across grid
    # states_ref: VMEM (BR, 128) int32 block of state indices
    # out_ref:    VMEM (BR, 128) f32 (lane-dense, full-vreg tiles)
    s = states_ref[...]
    acc = jnp.zeros(s.shape, dtype=jnp.float32)
    # 6-way unrolled compare/select LUT on the VPU; out-of-range -> 0.0.
    for k in range(N_STATES):
        acc = jnp.where(s == k, v_ref[k], acc)
    out_ref[...] = acc


# ----------------------------------------------------------------------------
# Jitted wrappers
# ----------------------------------------------------------------------------
@jax.jit
def _all_v_pallas(m, theta2d):
    """m: (6,7) f32; theta2d: (1,7) f32 -> (6,) f32 = M @ theta."""
    out = pl.pallas_call(
        _baird_all_v_kernel,
        out_shape=jax.ShapeDtypeStruct((N_STATES, 1), jnp.float32),
    )(m, theta2d)
    return out[:, 0]


def _round_up(x, m):
    return ((x + m - 1) // m) * m


@jax.jit
def _gather_pallas(v, states):
    """v: (6,) f32 cached values; states: (B,) int32 -> (B,) f32."""
    b = states.shape[0]
    rows = _round_up(b, LANE_BLOCK) // LANE_BLOCK
    if rows <= SUB_BLOCK:
        block_rows = rows          # single block; full-dim exception covers <8 rows
    elif rows >= 256:
        block_rows = BIG_SUB_BLOCK # big batches: amortize per-step overhead further
    else:
        block_rows = SUB_BLOCK     # full (8,128) vreg tiles
    rows = _round_up(rows, block_rows)
    bp = rows * LANE_BLOCK

    if bp != b:
        states = jnp.pad(states, (0, bp - b))   # single pad op, no zero+DUS pass
    states2d = states.reshape(rows, LANE_BLOCK)
    grid = (rows // block_rows,)

    out = pl.pallas_call(
        _baird_gather_kernel,
        out_shape=jax.ShapeDtypeStruct((rows, LANE_BLOCK), jnp.float32),
        grid=grid,
        in_specs=[
            # v stays resident in SMEM for all grid steps (cheap scalar reads).
            pl.BlockSpec(memory_space=pltpu.MemorySpace.SMEM),
            pl.BlockSpec((block_rows, LANE_BLOCK), lambda i: (i, 0)),
        ],
        out_specs=pl.BlockSpec((block_rows, LANE_BLOCK), lambda i: (i, 0)),
        compiler_params=pltpu.CompilerParams(
            # Batch blocks are independent -> both TensorCores on v7x when grid >= 2.
            dimension_semantics=("parallel",),
        ),
    )(v, states2d)
    return out.reshape(-1)[:b]


# ----------------------------------------------------------------------------
# Model construction (mirrors LinearBaird.init_m / init_theta)
# ----------------------------------------------------------------------------
def init_m():
    M = jnp.zeros((N_STATES, N_PARAMS), dtype=jnp.float32)
    M = M.at[:, 0].set(1.0)
    for i in range(5):
        M = M.at[i, i + 1].set(2.0)
    M = M.at[5, 0].set(2.0)
    M = M.at[5, 6].set(1.0)
    return M


def init_theta(key):
    theta = jnp.abs(jax.random.normal(key, (N_PARAMS,), dtype=jnp.float32))
    theta = theta.at[-1].add(2.0)
    return theta


class LinearBairdPallas:
    """Pallas-backed LinearBaird.

    v = M @ theta is computed once on-device by the Pallas all_v kernel and
    cached; forward(state) indexes the cache (no per-call kernel dispatch),
    forward_batch() runs the lane-dense gather kernel, all_v() returns the
    cached vector. Call set_theta() after changing theta.
    """

    def __init__(self, theta=None, key=None):
        self.M = init_m()                                       # (6, 7) f32
        if theta is None:
            theta = init_theta(key if key is not None else jax.random.PRNGKey(0))
        self.set_theta(theta)

    def set_theta(self, theta):
        self.theta = jnp.asarray(theta, dtype=jnp.float32).reshape(N_PARAMS)
        # Pallas kernel: v = M @ theta, cached until theta changes.
        self._v = _all_v_pallas(self.M, self.theta.reshape(1, N_PARAMS))

    def forward(self, state):
        # Free table lookup into the Pallas-computed value cache.
        return self._v[state]

    def forward_batch(self, states):
        states = jnp.asarray(states, dtype=jnp.int32)
        return _gather_pallas(self._v, states)

    def all_v(self):
        return self._v


# ----------------------------------------------------------------------------
# Self-test
# ----------------------------------------------------------------------------
if __name__ == "__main__":
    key = jax.random.PRNGKey(0)
    key_theta, key_states = jax.random.split(key)

    model = LinearBairdPallas(key=key_theta)
    M, theta = model.M, model.theta
    ref_v = M @ theta

    ok = True

    # Single-state forward (cached Pallas all_v) against the dense reference.
    for state in range(N_STATES):
        val = jax.block_until_ready(model.forward(state))
        if not jnp.allclose(val, jnp.dot(M[state, :], theta), rtol=1e-6, atol=1e-6):
            ok = False

    # Small batch (single (1,128) block, grid=(1,)).
    states_small = jnp.array([0, 3, 5, 1, 4, 2, 5, 0], dtype=jnp.int32)
    vals_small = jax.block_until_ready(model.forward_batch(states_small))
    if not jnp.allclose(vals_small, ref_v[states_small], rtol=1e-6, atol=1e-6):
        ok = False

    # Larger batch (multi-block (8,128) path with padding, grid=(2,)).
    states_big = jax.random.randint(key_states, (1300,), 0, N_STATES, dtype=jnp.int32)
    vals_big = jax.block_until_ready(model.forward_batch(states_big))
    if not jnp.allclose(vals_big, ref_v[states_big], rtol=1e-6, atol=1e-6):
        ok = False

    # all_v() == M @ theta (computed by the Pallas all_v kernel).
    av = jax.block_until_ready(model.all_v())
    if not jnp.allclose(av, ref_v, rtol=1e-6, atol=1e-6):
        ok = False

    if ok:
        print("KERNEL_OK")
    else:
        print("KERNEL_MISMATCH")
</pallas_src>

<mosaic_0001>
module attributes {stable_mosaic.version = 11 : i64} {
  func.func @_baird_all_v_kernel(%arg0: memref<6x7xf32, #tpu.memory_space<vmem>>, %arg1: memref<1x7xf32, #tpu.memory_space<vmem>>, %arg2: memref<6x1xf32, #tpu.memory_space<vmem>>) attributes {dimension_semantics = [], scalar_prefetch = 0 : i64, scratch_operands = 0 : i64, tpu.core_type = #tpu.core_type<tc>} {
    %c0 = arith.constant 0 : index
    %c0_0 = arith.constant 0 : index
    %0 = vector.load %arg0[%c0, %c0_0] : memref<6x7xf32, #tpu.memory_space<vmem>>, vector<6x7xf32>
    %c0_1 = arith.constant 0 : index
    %c0_2 = arith.constant 0 : index
    %1 = vector.load %arg1[%c0_1, %c0_2] : memref<1x7xf32, #tpu.memory_space<vmem>>, vector<1x7xf32>
    %2 = vector.broadcast %1 : vector<1x7xf32> to vector<6x7xf32>
    %3 = arith.mulf %0, %2 : vector<6x7xf32>
    %cst = arith.constant dense<0.000000e+00> : vector<6xf32>
    %4 = vector.multi_reduction <add>, %3, %cst [1] : vector<6x7xf32> to vector<6xf32>
    %5 = vector.shape_cast %4 : vector<6xf32> to vector<6x1xf32>
    %c0_3 = arith.constant 0 : index
    %c0_4 = arith.constant 0 : index
    %6 = vector.load %arg2[%c0_3, %c0_4] : memref<6x1xf32, #tpu.memory_space<vmem>>, vector<6x1xf32>
    tpu.vector_store %arg2[%c0_3, %c0_4], %5 {strides = array<i32>} : memref<6x1xf32, #tpu.memory_space<vmem>>, vector<6x1xf32>,
    return
  }
}

</mosaic_0001>

<llo_original>
// kernel: _all_v_pallas.1
$region0: #{_all_v_pallas.1}
  #allocation0 [shape = 'u32[]', space=smem, size = 0x4, offset = 0x4, fixed_abs, tag = 'smem constant byte address 0x4 - core index']
  #allocation1 [shape = 'u32[144,128]{1,0:T(1,128)}', space=vmem, size = 0x12000, scoped, tag = 'internal scratch']
  %s0 = inlined_call_operand.hbm [shape: f32[6,7], index: 0, kind: input, shape index: {}]
  %s1 = inlined_call_operand.vmem [shape: f32[1,7], index: 1, kind: input, shape index: {}]
  %s2 = inlined_call_operand.vmem [shape: f32[6,1], index: 2, kind: output, shape index: {}]
  %s3 = sld [smem:[#allocation0]]
  $region22: #{_all_v_pallas.1} parent=0
    _
  %s5 = ssub.s32 1, %s3
  %s6 = scalar_select 0, %s5, %s3
  $region1: #{_all_v_pallas.1} parent=0
    #allocation2 [shape = 'u8[4096]{0}', space=vmem, size = 0x1000, scoped, tag = 'input window, operand 0, single buffered']
    #allocation3 [shape = 's32[1]{0}', space=sflag, size = 0x4, scoped, tag = 'scoped memory for _all_v_pallas.1']
    %7 = vsyncpa [#allocation3], 0
    // Predicated region
    $region2: #{_all_v_pallas.1} parent=1 // pred_check
      _
    $region3: #{_all_v_pallas.1} parent=1 // pred_check_branch
      %9 = sbr.rel (0) target = $region5
    $region4: #{_all_v_pallas.1} parent=1 // pred_region
      %s11 = ssub.s32 128, 128
      %12 = vsyncadd [#allocation3], %s11
      %s14 = sshll.u32 [#allocation2], 4
      %s15 = int_to_ptr.vmem [resolvable:$true] %s14
      %17 = dma.hbm_to_vmem [thread:$0]  %s0, 128, %s15, [#allocation3]
    $region5: #{_all_v_pallas.1} parent=1 // pred_fallthru
      _
    // Predicated region
    $region6: #{_all_v_pallas.1} parent=1 // pred_check
      _
    $region7: #{_all_v_pallas.1} parent=1 // pred_check_branch
      %19 = sbr.rel (0) target = $region9
    $region8: #{_all_v_pallas.1} parent=1 // pred_region
      _
    $region9: #{_all_v_pallas.1} parent=1 // pred_fallthru
      _
    // Predicated region
    $region10: #{_all_v_pallas.1} parent=1 // pred_check
      _
    $region11: #{_all_v_pallas.1} parent=1 // pred_check_branch
      %21 = sbr.rel (0) target = $region13
    $region12: #{_all_v_pallas.1} parent=1 // pred_region
      %22 = dma.done [#allocation3], 128
    $region13: #{_all_v_pallas.1} parent=1 // pred_fallthru
      _
    %v23 = vld [vmem:[#allocation2] sm:$0x3f]
    %v24 = vld [vmem:[%s1] sm:$0x1]
    %v26 = vlaneseq
    %v27 = vshrl.u32 %v26, 7
    %v28 = vsub.s32 0, %v27
    %v29 = vrot.slane %v24, %v28
    %v31 = vmul.f32 %v23, %v29
    %vm32 = vcmask 54272
    %v33 = vsel %vm32, %v31, 0.0
    %34 = vadd.xlane.f32.xlu0 %v33
    %v35 = vpop.xlane.xlu0 %34
    %vm36 = vcmask 5120
    %37 = vst.msk [vmem:[%s2] sm:$0x3f] %vm36, %v35
    // Predicated region
    $region14: #{_all_v_pallas.1} parent=1 // pred_check
      _
    $region15: #{_all_v_pallas.1} parent=1 // pred_check_branch
      %39 = sbr.rel (0) target = $region17
    $region16: #{_all_v_pallas.1} parent=1 // pred_region
      _
    $region17: #{_all_v_pallas.1} parent=1 // pred_fallthru
      _
    // Predicated region
    $region18: #{_all_v_pallas.1} parent=1 // pred_check
      _
    $region19: #{_all_v_pallas.1} parent=1 // pred_check_branch
      %41 = sbr.rel (0) target = $region21
    $region20: #{_all_v_pallas.1} parent=1 // pred_region
      _
    $region21: #{_all_v_pallas.1} parent=1 // pred_fallthru
      _
    %42 = vsyncpa [#allocation3], 1

</llo_original>
